<compile_context>
chip_gen: v7x
topology: tpu7x:2x2x1
jax: 0.10.0
libtpu: 0.0.40
codegen_flags: <defaults>
</compile_context>

<pallas_src>
import jax
import jax.numpy as jnp
from jax.experimental import pallas as pl
from jax.experimental.pallas import tpu as pltpu

LANE = 128
CHUNK_BYTES = 16 * 1024 * 1024          # target bytes per grid block (DMA granularity only; no VMEM used)
SPLIT_THRESHOLD_BYTES = 512 * 1024      # below this, a single DMA is issued
N_INFLIGHT = 4                          # chunked DMAs kept in flight per grid block


def _resolve_shape(shape, numel):
    """Resolve a single -1 dimension exactly like torch.Tensor.view."""
    shape = list(shape)
    neg = [i for i, s in enumerate(shape) if s == -1]
    if len(neg) > 1:
        raise ValueError("only one dimension can be inferred (-1)")
    if neg:
        known = 1
        for s in shape:
            if s != -1:
                known *= s
        if known == 0 or numel % known != 0:
            raise ValueError(f"shape {tuple(shape)} is invalid for input of size {numel}")
        shape[neg[0]] = numel // known
    else:
        prod = 1
        for s in shape:
            prod *= s
        if prod != numel:
            raise ValueError(f"shape {tuple(shape)} is invalid for input of size {numel}")
    return tuple(shape)


def _sublane(dtype):
    # Native sublane packing: 8 for 4-byte dtypes, 16 for bf16/f16, 32 for int8/fp8.
    # TODO(synk): sub-byte dtypes (int4/fp4) would need packed-size handling here.
    itemsize = jnp.dtype(dtype).itemsize
    return max(8, 32 // max(itemsize, 1))


def _dma_copy_2d(x2d):
    """Materialize a copy of a 2D array via direct HBM->HBM DMA (no VMEM staging)."""
    rows, cols = x2d.shape
    dtype = x2d.dtype
    itemsize = jnp.dtype(dtype).itemsize
    sub = _sublane(dtype)
    total_bytes = rows * cols * itemsize

    # ---- choose grid blocking over rows (all static Python ints) ----
    if rows >= 2 * sub and total_bytes > SPLIT_THRESHOLD_BYTES:
        want_blocks = max(2, pl.cdiv(total_bytes, CHUNK_BYTES))
        want_blocks = min(want_blocks, rows // sub)       # keep >= sub rows per block
        if want_blocks > 1 and want_blocks % 2 == 1:
            want_blocks += 1                              # even split -> balanced on v7x's 2 TCs
        want_blocks = min(want_blocks, rows // sub)
        block_rows = max(sub, ((rows // want_blocks) // sub) * sub)
    else:
        block_rows = rows

    num_full = max(1, rows // block_rows)
    rem_rows = rows - num_full * block_rows               # ragged tail (static)
    rem_start = num_full * block_rows
    row_aligned = (block_rows % sub == 0)

    # ---- split each block into a few DMAs kept in flight (static sizes) ----
    n_inflight = min(N_INFLIGHT, max(1, block_rows // sub))
    base = block_rows // n_inflight
    if base >= sub:
        base = (base // sub) * sub
    sub_sizes = [base] * (n_inflight - 1)
    sub_sizes.append(block_rows - base * (n_inflight - 1))
    sub_sizes = [s for s in sub_sizes if s > 0]
    n_main = len(sub_sizes)
    n_sems = n_main + (1 if rem_rows else 0)

    def kernel(x_hbm, o_hbm, sem):
        b = pl.program_id(0)
        row0 = b * block_rows
        if row_aligned:
            row0 = pl.multiple_of(row0, sub)

        # Start all sub-chunk DMAs for this block (kept in flight).
        copies = []
        off = 0
        for j, sz in enumerate(sub_sizes):
            cp = pltpu.make_async_copy(
                x_hbm.at[pl.ds(row0 + off, sz), :],
                o_hbm.at[pl.ds(row0 + off, sz), :],
                sem.at[j],
            )
            cp.start()
            copies.append(cp)
            off += sz

        # Ragged row tail: one extra static-size DMA issued by the last grid step.
        if rem_rows:
            @pl.when(b == num_full - 1)
            def _start_rem():
                pltpu.make_async_copy(
                    x_hbm.at[pl.ds(rem_start, rem_rows), :],
                    o_hbm.at[pl.ds(rem_start, rem_rows), :],
                    sem.at[n_main],
                ).start()

        for cp in copies:
            cp.wait()

        if rem_rows:
            @pl.when(b == num_full - 1)
            def _wait_rem():
                pltpu.make_async_copy(
                    x_hbm.at[pl.ds(rem_start, rem_rows), :],
                    o_hbm.at[pl.ds(rem_start, rem_rows), :],
                    sem.at[n_main],
                ).wait()

    return pl.pallas_call(
        kernel,
        out_shape=jax.ShapeDtypeStruct((rows, cols), dtype),
        grid=(num_full,),
        in_specs=[pl.BlockSpec(memory_space=pl.ANY)],
        out_specs=pl.BlockSpec(memory_space=pl.ANY),
        scratch_shapes=[pltpu.SemaphoreType.DMA((n_sems,))],
        compiler_params=pltpu.CompilerParams(
            dimension_semantics=("parallel",),   # shards grid blocks across v7x's 2 TCs
        ),
        cost_estimate=pl.CostEstimate(
            flops=0, transcendentals=0, bytes_accessed=2 * rows * cols * itemsize
        ),
    )(x2d)


def pallas_view(x, *shape, materialize=True):
    """Equivalent of View(*shape)(x): reshape preserving C-order element layout.

    materialize=False returns a metadata-only reshape (zero HBM traffic), which
    is what PyTorch's .view() actually costs.  materialize=True produces a
    fresh buffer via the direct HBM->HBM DMA copy kernel.
    """
    numel = x.size
    target = _resolve_shape(shape, numel)
    if numel == 0 or not materialize:
        return jnp.reshape(x, target)

    # ---- choose a 2D working layout (rows, cols); wrapper reshapes of
    # contiguous data are metadata-only, all HBM traffic is in the one kernel.
    if len(target) == 2 and target[-1] % LANE == 0:
        # Write the output directly in its target 2D lane-aligned shape so the
        # trailing reshape is a no-op.
        rows, cols = target
    elif numel % LANE == 0:
        # Widen the lane dimension (up to 32*128) when the size allows.
        w = next(c for c in (32, 16, 8, 4, 2, 1) if (numel // LANE) % c == 0)
        cols = LANE * w
        rows = numel // cols
    else:
        # Lane-misaligned numel: whole array as a single row, copied by one DMA.
        # No pad / slice passes -- DMA does not require (8,128)-divisible shapes.
        rows, cols = 1, numel

    out2d = _dma_copy_2d(x.reshape(rows, cols))
    return out2d.reshape(target)


class View:
    """Drop-in analogue of the PyTorch View(nn.Module)."""

    def __init__(self, *shape):
        self.shape = shape

    def __call__(self, x, materialize=True):
        return pallas_view(x, *self.shape, materialize=materialize)


if __name__ == "__main__":
    key = jax.random.PRNGKey(0)
    # Small NCHW-shaped input, consistent with typical usage of View in a conv
    # net, e.g. View(batch, -1) flattening conv features before a linear layer.
    x = jax.random.normal(key, (2, 4, 16, 16), dtype=jnp.float32)

    # Module-instance semantics: View(2, -1) (output written directly lane-dense).
    view = View(2, -1)
    y = jax.block_until_ready(view(x))
    assert y.shape == (2, 4 * 16 * 16)
    assert y.dtype == x.dtype
    assert jnp.array_equal(y, x.reshape(2, -1))

    # Multi-dim target, exercising the lane-widened working layout.
    y2 = jax.block_until_ready(pallas_view(x, 8, 16, 16))
    assert jnp.array_equal(y2, x.reshape(8, 16, 16))

    # Lane-misaligned small numel (105): single whole-array DMA, no pad/slice.
    x3 = jax.random.normal(jax.random.PRNGKey(0), (3, 5, 7), dtype=jnp.float32)
    y3 = jax.block_until_ready(pallas_view(x3, 105))
    assert jnp.array_equal(y3, x3.reshape(105))

    # Larger case exercising the multi-block parallel grid, in-flight chunked
    # DMAs, and the ragged row-tail (300 % 144 != 0) handled inside pl.when.
    x4 = jax.random.normal(jax.random.PRNGKey(1), (2, 150, 512), dtype=jnp.float32)
    y4 = jax.block_until_ready(pallas_view(x4, 300, 512))
    assert jnp.array_equal(y4, x4.reshape(300, 512))

    # Metadata-only path (true PyTorch .view() cost model): no copy at all.
    y5 = jax.block_until_ready(pallas_view(x, 2, 4, 256, materialize=False))
    assert jnp.array_equal(y5, x.reshape(2, 4, 256))

    print("KERNEL_OK")
</pallas_src>

<mosaic_0001>
module attributes {stable_mosaic.version = 11 : i64} {
  func.func @kernel(%arg0: i32, %arg1: memref<2x1024xf32, #tpu.memory_space<any>>, %arg2: memref<2x1024xf32, #tpu.memory_space<any>>, %arg3: memref<1x!tpu.dma_semaphore, #tpu.memory_space<semaphore_mem>>) attributes {dimension_semantics = [#tpu.dimension_semantics<parallel>], iteration_bounds = array<i64: 1>, scalar_prefetch = 0 : i64, scratch_operands = 1 : i64, tpu.core_type = #tpu.core_type<tc>, window_params = [{}, {}]} {
    %c2_i32 = arith.constant 2 : i32
    %0 = arith.muli %arg0, %c2_i32 : i32
    %c0_i32 = arith.constant 0 : i32
    %1 = arith.addi %0, %c0_i32 : i32
    %c0_i32_0 = arith.constant 0 : i32
    %2 = arith.addi %0, %c0_i32_0 : i32
    %c0_i32_1 = arith.constant 0 : i32
    %c0_i32_2 = arith.constant 0 : i32
    %3 = tpu.memref_slice %arg1[%1, %c0_i32_2] : memref<2x1024xf32, #tpu.memory_space<any>> -> memref<2x1024xf32, #tpu.memory_space<any>>
    %c0_i32_3 = arith.constant 0 : i32
    %4 = tpu.memref_slice %arg2[%2, %c0_i32_3] : memref<2x1024xf32, #tpu.memory_space<any>> -> memref<2x1024xf32, #tpu.memory_space<any>>
    %5 = tpu.memref_slice %arg3[%c0_i32_1] : memref<1x!tpu.dma_semaphore, #tpu.memory_space<semaphore_mem>> -> memref<1x!tpu.dma_semaphore, #tpu.memory_space<semaphore_mem>>
    %6 = tpu.memref_squeeze %5 : memref<1x!tpu.dma_semaphore, #tpu.memory_space<semaphore_mem>> -> memref<!tpu.dma_semaphore, #tpu.memory_space<semaphore_mem>>
    tpu.enqueue_dma source(%3 : memref<2x1024xf32, #tpu.memory_space<any>>) target(%4 : memref<2x1024xf32, #tpu.memory_space<any>>) target_semaphore(%6 : memref<!tpu.dma_semaphore, #tpu.memory_space<semaphore_mem>>)
    %c0_i32_4 = arith.constant 0 : i32
    %c0_i32_5 = arith.constant 0 : i32
    %7 = tpu.memref_slice %arg1[%1, %c0_i32_5] : memref<2x1024xf32, #tpu.memory_space<any>> -> memref<2x1024xf32, #tpu.memory_space<any>>
    %c0_i32_6 = arith.constant 0 : i32
    %8 = tpu.memref_slice %arg2[%2, %c0_i32_6] : memref<2x1024xf32, #tpu.memory_space<any>> -> memref<2x1024xf32, #tpu.memory_space<any>>
    %9 = tpu.memref_slice %arg3[%c0_i32_4] : memref<1x!tpu.dma_semaphore, #tpu.memory_space<semaphore_mem>> -> memref<1x!tpu.dma_semaphore, #tpu.memory_space<semaphore_mem>>
    %10 = tpu.memref_squeeze %9 : memref<1x!tpu.dma_semaphore, #tpu.memory_space<semaphore_mem>> -> memref<!tpu.dma_semaphore, #tpu.memory_space<semaphore_mem>>
    tpu.wait_dma2 semaphore(%10 : memref<!tpu.dma_semaphore, #tpu.memory_space<semaphore_mem>>) src(%7 : memref<2x1024xf32, #tpu.memory_space<any>>) dst(%8 : memref<2x1024xf32, #tpu.memory_space<any>>)
    return
  }
}

</mosaic_0001>

<llo_original>
// kernel: tpu_custom_call.1
$region0: #{tpu_custom_call.1}
  #allocation0 [shape = 'u32[]', space=smem, size = 0x4, offset = 0x4, fixed_abs, tag = 'smem constant byte address 0x4 - core index']
  #allocation1 [shape = 'u32[144,128]{1,0:T(1,128)}', space=vmem, size = 0x12000, scoped, tag = 'internal scratch']
  #allocation2 [shape = 's32[1]{0}', space=sflag, size = 0x4, scoped, tag = 'scratch operand']
  #allocation3 [shape = 's32[]', space=sflag, size = 0x4, offset = 0, fixed_abs, tag = 'sflag constant byte address 0x0 - dummy sync flag']
  #allocation4 [shape = 'u32[0]{0}', space=smem, size = 0, offset = 0, fixed_abs, tag = 'smem constant byte address 0x0 - null']
  %s0 = inlined_call_operand.hbm [shape: f32[2,1024], index: 0, kind: input, shape index: {}]
  %s1 = inlined_call_operand.hbm [shape: f32[2,1024], index: 1, kind: output, shape index: {}]
  %s2 = sld [smem:[#allocation0]]
  $region2: #{tpu_custom_call.1} parent=0
    _
  %s4 = ssub.s32 1, %s2
  %s5 = scalar_select 0, %s4, %s2
  %s6 = smul.u32 0, 2
  %s7 = sshra.s32 %s6, 1
  %s8 = sand.u32 %s6, 1
  %s9 = smul.u32 %s7, 8
  %s10 = smul.addr %s9, 32
  %s11 = scalar_lea.hbm %s0, %s10
  %s12 = smul.addr %s9, 32
  %s13 = scalar_lea.hbm %s1, %s12
  %s15 = sshll.u32 1, 14
  %s16 = sxor.u32 4294967295, %s15
  %s19 = sshll.u32 3, 24
  %s20 = sxor.u32 4294967295, %s19
  %s21 = sand.u32 0, %s20
  %s23 = sor.u32 %s21, 0
  %26 = dma.general %s11, 256, %s13, [#allocation2], [#allocation3], [#allocation4], %s23, 0
  %s27 = smul.u32 2, 1
  %s28 = smul.u32 %s27, 8
  %s29 = sshll.u32 %s28, 4
  %30 = dma.done [#allocation2], %s29
  %31 = vsyncmov [#allocation2]
  %s32 = vpop.sfrf %31
  %p33 = scmp.eq.s32.totalorder %s32, 0
  %p34 = pneg %p33
  %36 = shalt.err (%p34)

</llo_original>
